<compile_context>
chip_gen: v7x
topology: tpu7x:2x2x1
jax: 0.10.0
libtpu: 0.0.40
codegen_flags: <defaults>
</compile_context>

<pallas_src>
import jax
import jax.numpy as jnp
from jax.experimental import pallas as pl
from jax.experimental.pallas import tpu as pltpu

_LANE_WIDTH = 512      # lane-dense last dim, multiple of 128
_SUBLANE = 8           # sublane granularity for f32
_MAX_TILE_ROWS = 1024  # 1024 x 512 f32 = 2 MiB per block (VMEM-safe on v7x)


def _copy_kernel(x_ref, o_ref):
    # Whole-tile unmasked copy: full (tile_rows, 512) block -> single vld/vst
    # pair per vreg, DMA/HBM-bandwidth bound.
    o_ref[...] = x_ref[...]


def _round_up(n: int, m: int) -> int:
    return ((n + m - 1) // m) * m


def battery_feature_extractor_forward(x: jax.Array, *, force_copy: bool = False) -> jax.Array:
    """Pallas implementation of BatteryFeatureExtractor.forward (identity).

    x: [batch, seq_len, input_features] -> returned unchanged.

    force_copy=False (default): elide the kernel entirely and return x
        (the module's forward is literally `return x`).
    force_copy=True: produce a fresh output buffer via a lane-dense Pallas
        copy kernel (only useful if a distinct physical buffer is required).
    """
    # TODO(synk): the dv/dt, efficiency-ratio, power and moving-average feature
    # engineering in the PyTorch source is dead code (after `return x`), so it
    # is intentionally not reproduced.
    if not force_copy:
        # Highest-value optimization from review: no kernel, no HBM traffic.
        return x

    b, s, f = x.shape
    total = b * s * f
    dtype = x.dtype

    # Flatten to a lane-dense 2-D slab: last dim = 512 (multiple of 128),
    # rows padded to a multiple of the tile-row count (itself a multiple of 8)
    # so every block is full-sized and every store is unmasked.
    rows = pl.cdiv(total, _LANE_WIDTH)
    tile_rows = min(_MAX_TILE_ROWS, _round_up(rows, _SUBLANE))
    rows_padded = _round_up(rows, tile_rows)
    padded_total = rows_padded * _LANE_WIDTH

    flat = x.reshape(total)
    if padded_total != total:
        flat = jnp.pad(flat, (0, padded_total - total))
    slab = flat.reshape(rows_padded, _LANE_WIDTH)

    grid_size = rows_padded // tile_rows
    # Only shard across TensorCores (v7x) when there is enough work.
    dim_sem = ("parallel",) if grid_size >= 32 else ("arbitrary",)

    out_slab = pl.pallas_call(
        _copy_kernel,
        out_shape=jax.ShapeDtypeStruct((rows_padded, _LANE_WIDTH), dtype),
        grid=(grid_size,),
        in_specs=[pl.BlockSpec((tile_rows, _LANE_WIDTH), lambda i: (i, 0))],
        out_specs=pl.BlockSpec((tile_rows, _LANE_WIDTH), lambda i: (i, 0)),
        compiler_params=pltpu.CompilerParams(dimension_semantics=dim_sem),
    )(slab)

    return out_slab.reshape(padded_total)[:total].reshape(b, s, f)


if __name__ == "__main__":
    # Small shapes consistent with the module: batch=2, seq_len=8, features=7.
    key = jax.random.PRNGKey(0)
    x = jax.random.normal(key, (2, 8, 7), dtype=jnp.float32)

    # Hot path: kernel elided, identity.
    out_fast = battery_feature_extractor_forward(x)
    out_fast = jax.block_until_ready(out_fast)
    assert out_fast.shape == x.shape and out_fast.dtype == x.dtype
    assert bool(jnp.array_equal(out_fast, x))

    # Copy path: exercise the Pallas kernel once (lane-dense slab copy).
    out_copy = battery_feature_extractor_forward(x, force_copy=True)
    out_copy = jax.block_until_ready(out_copy)
    assert out_copy.shape == x.shape and out_copy.dtype == x.dtype
    assert bool(jnp.array_equal(out_copy, x))

    print("KERNEL_OK")
</pallas_src>

<mosaic_0001>
module attributes {stable_mosaic.version = 11 : i64} {
  func.func @_copy_kernel(%arg0: i32, %arg1: memref<8x512xf32, #tpu.memory_space<vmem>>, %arg2: memref<8x512xf32, #tpu.memory_space<vmem>>) attributes {dimension_semantics = [#tpu.dimension_semantics<arbitrary>], iteration_bounds = array<i64: 1>, scalar_prefetch = 0 : i64, scratch_operands = 0 : i64, tpu.core_type = #tpu.core_type<tc>, window_params = [{transform_indices = @transform_0, window_bounds = array<i64: 8, 512>}, {transform_indices = @transform_1, window_bounds = array<i64: 8, 512>}]} {
    %c0 = arith.constant 0 : index
    %c0_0 = arith.constant 0 : index
    %0 = vector.load %arg1[%c0, %c0_0] : memref<8x512xf32, #tpu.memory_space<vmem>>, vector<8x512xf32>
    %c0_1 = arith.constant 0 : index
    %c0_2 = arith.constant 0 : index
    %1 = vector.load %arg2[%c0_1, %c0_2] : memref<8x512xf32, #tpu.memory_space<vmem>>, vector<8x512xf32>
    tpu.vector_store %arg2[%c0_1, %c0_2], %0 {strides = array<i32>} : memref<8x512xf32, #tpu.memory_space<vmem>>, vector<8x512xf32>,
    return
  }
  func.func @transform_0(%arg0: i32) -> (i32, i32) {
    %c0_i32 = arith.constant 0 : i32
    %c0_i32_0 = arith.constant 0 : i32
    return %arg0, %c0_i32 : i32, i32
  }
  func.func @transform_1(%arg0: i32) -> (i32, i32) {
    %c0_i32 = arith.constant 0 : i32
    %c0_i32_0 = arith.constant 0 : i32
    return %arg0, %c0_i32 : i32, i32
  }
}

</mosaic_0001>

<llo_original>
// kernel: tpu_custom_call.1
$region0: #{tpu_custom_call.1}
  #allocation0 [shape = 'u32[]', space=smem, size = 0x4, offset = 0x4, fixed_abs, tag = 'smem constant byte address 0x4 - core index']
  #allocation1 [shape = 'u32[144,128]{1,0:T(1,128)}', space=vmem, size = 0x12000, scoped, tag = 'internal scratch']
  %s0 = inlined_call_operand.hbm [shape: f32[8,512], index: 0, kind: input, shape index: {}]
  %s1 = inlined_call_operand.hbm [shape: f32[8,512], index: 1, kind: output, shape index: {}]
  %s2 = sld [smem:[#allocation0]]
  $region18: #{tpu_custom_call.1} parent=0
    _
  %s4 = ssub.s32 1, %s2
  %s5 = scalar_select 0, %s4, %s2
  $region1: #{tpu_custom_call.1} parent=0
    #allocation2 [shape = 'u8[16384]{0}', space=vmem, size = 0x4000, scoped, tag = 'input window, operand 0, single buffered']
    #allocation3 [shape = 's32[1]{0}', space=sflag, size = 0x4, scoped, tag = 'scoped memory for tpu_custom_call.1']
    #allocation4 [shape = 's32[1]{0}', space=sflag, size = 0x4, scoped, tag = 'scoped memory for tpu_custom_call.1']
    #allocation5 [shape = 'u8[16384]{0}', space=vmem, size = 0x4000, scoped, tag = 'output window, operand 0, single buffered']
    %6 = vsyncpa [#allocation3], 0
    %7 = vsyncpa [#allocation4], 0
    // Predicated region
    $region2: #{tpu_custom_call.1} parent=1 // pred_check
      _
    $region3: #{tpu_custom_call.1} parent=1 // pred_check_branch
      %9 = sbr.rel (0) target = $region5
    $region4: #{tpu_custom_call.1} parent=1 // pred_region
      %s11 = ssub.s32 512, 512
      %12 = vsyncadd [#allocation3], %s11
      %s14 = sshll.u32 [#allocation2], 4
      %s15 = int_to_ptr.vmem [resolvable:$true] %s14
      %17 = dma.hbm_to_vmem [thread:$0]  %s0, 512, %s15, [#allocation3]
    $region5: #{tpu_custom_call.1} parent=1 // pred_fallthru
      _
    // Predicated region
    $region6: #{tpu_custom_call.1} parent=1 // pred_check
      _
    $region7: #{tpu_custom_call.1} parent=1 // pred_check_branch
      %19 = sbr.rel (0) target = $region9
    $region8: #{tpu_custom_call.1} parent=1 // pred_region
      %20 = dma.done [#allocation3], 512
    $region9: #{tpu_custom_call.1} parent=1 // pred_fallthru
      _
    %v21 = vld [vmem:[#allocation2] sm:$0xff]
    %v22 = vld [vmem:[#allocation2 + $0x8] sm:$0xff]
    %v23 = vld [vmem:[#allocation2 + $0x10] sm:$0xff]
    %v24 = vld [vmem:[#allocation2 + $0x18] sm:$0xff]
    %25 = vst [vmem:[#allocation5] sm:$0xff] %v21
    %26 = vst [vmem:[#allocation5 + $0x8] sm:$0xff] %v22
    %27 = vst [vmem:[#allocation5 + $0x10] sm:$0xff] %v23
    %28 = vst [vmem:[#allocation5 + $0x18] sm:$0xff] %v24
    // Predicated region
    $region10: #{tpu_custom_call.1} parent=1 // pred_check
      _
    $region11: #{tpu_custom_call.1} parent=1 // pred_check_branch
      %30 = sbr.rel (0) target = $region13
    $region12: #{tpu_custom_call.1} parent=1 // pred_region
      %s32 = ssub.s32 512, 512
      %33 = vsyncadd [#allocation4], %s32
      %s35 = sshll.u32 [#allocation5], 4
      %s36 = int_to_ptr.vmem [resolvable:$true] %s35
      %38 = dma.vmem_to_hbm [thread:$0]  %s36, 512, %s1, [#allocation4]
    $region13: #{tpu_custom_call.1} parent=1 // pred_fallthru
      _
    // Predicated region
    $region14: #{tpu_custom_call.1} parent=1 // pred_check
      _
    $region15: #{tpu_custom_call.1} parent=1 // pred_check_branch
      %40 = sbr.rel (0) target = $region17
    $region16: #{tpu_custom_call.1} parent=1 // pred_region
      %41 = dma.done [#allocation4], 512
    $region17: #{tpu_custom_call.1} parent=1 // pred_fallthru
      _
    %42 = vsyncpa [#allocation3], 1
    %43 = vsyncpa [#allocation4], 1

</llo_original>
